<compile_context>
chip_gen: v5e
topology: v5e:2x2
jax: 0.10.0
libtpu: 0.0.40
codegen_flags: <defaults>
</compile_context>

<pallas_src>
import functools

import jax
import jax.numpy as jnp
from jax.experimental import pallas as pl
from jax.experimental.pallas import tpu as pltpu


def _role_value_kernel(x_ref, w1_ref, b1_ref, w2_ref, b2_ref, w3_ref, b3_ref,
                       o_ref):
    # Fused MLP: relu(x @ W1 + b1) -> relu(. @ W2 + b2) -> fc3 (lane-dense row).
    x = x_ref[...].astype(jnp.float32)                     # (tm, d_in)

    h1 = jnp.dot(x, w1_ref[...], preferred_element_type=jnp.float32)
    h1 = jnp.maximum(h1 + b1_ref[...], 0.0)                # (tm, H)

    h2 = jnp.dot(h1, w2_ref[...], preferred_element_type=jnp.float32)
    h2 = jnp.maximum(h2 + b2_ref[...], 0.0)                # (tm, H)

    # fc3: contract the hidden dim with w3 on the LHS so the per-row values
    # come out along the lane axis -> a single lane-dense (1, tm) store.
    # w3 is broadcast to 8 identical rows so the matmul M-dim is a full sublane
    # tile (rows 1..7 are discarded).
    hidden = w3_ref.shape[1]
    w3_rows = jnp.broadcast_to(w3_ref[...], (8, hidden))   # cheap sublane bcast
    v8 = jax.lax.dot_general(
        w3_rows, h2,
        dimension_numbers=(((1,), (1,)), ((), ())),        # contract hidden dims
        preferred_element_type=jnp.float32)                # (8, tm)
    v = v8[0:1, :] + b3_ref[0]                             # (1, tm)

    o_ref[...] = v.astype(o_ref.dtype)


@functools.partial(jax.jit, static_argnames=("tm",))
def role_value_net(inputs, params, *, tm=256):
    """inputs: (..., input_shape) float32; returns (..., 1) float32.

    tm: row-tile size. Must be a multiple of 128 (lane-dense output block).
        256 is a good default; sweep 128-512. For very large batches on v7x
        keep the grid at >= 8 steps so both TensorCores get work.
    """
    w1, b1, w2, b2, w3, b3 = params
    d_in, hidden = w1.shape

    lead_shape = inputs.shape[:-1]
    x = inputs.reshape(-1, d_in)
    m = x.shape[0]

    assert tm % 128 == 0, "tm must be a multiple of 128"
    # Clamp the tile to M for small inputs: the block then equals the full
    # array (always a legal block shape) and the grid has one exact step.
    tm_eff = min(tm, m)
    grid = (pl.cdiv(m, tm_eff),)

    # Biases / w3 as rows so they broadcast over the row tile inside the kernel.
    b1r = b1.reshape(1, hidden)
    b2r = b2.reshape(1, hidden)
    w3r = w3.reshape(1, hidden)          # (hidden, 1) -> (1, hidden) row

    out = pl.pallas_call(
        _role_value_kernel,
        out_shape=jax.ShapeDtypeStruct((1, m), jnp.float32),
        grid_spec=pltpu.PrefetchScalarGridSpec(
            num_scalar_prefetch=0,
            grid=grid,
            in_specs=[
                # activations: tile the row axis, full feature axis.
                pl.BlockSpec((tm_eff, d_in), lambda i: (i, 0)),
                # parameters: full blocks, resident for every grid step.
                pl.BlockSpec((d_in, hidden), lambda i: (0, 0)),
                pl.BlockSpec((1, hidden), lambda i: (0, 0)),
                pl.BlockSpec((hidden, hidden), lambda i: (0, 0)),
                pl.BlockSpec((1, hidden), lambda i: (0, 0)),
                pl.BlockSpec((1, hidden), lambda i: (0, 0)),
                # b3 scalar lives in SMEM (no (1,1) VMEM block bookkeeping).
                pl.BlockSpec(memory_space=pltpu.MemorySpace.SMEM),
            ],
            # Lane-dense output: one (1, tm) row per grid step.
            out_specs=pl.BlockSpec((1, tm_eff), lambda i: (0, i)),
        ),
        compiler_params=pltpu.CompilerParams(
            dimension_semantics=("parallel",)),
    )(x, w1, b1r, w2, b2r, w3r, b3)

    return out.reshape(*lead_shape, 1)


def init_params(key, input_shape, hidden):
    """Deterministic init mimicking nn.Linear default (uniform +/- 1/sqrt(fan_in))."""
    ks = jax.random.split(key, 6)

    def lin(kw, kb, fan_in, fan_out):
        bound = 1.0 / jnp.sqrt(jnp.float32(fan_in))
        w = jax.random.uniform(kw, (fan_in, fan_out), jnp.float32, -bound, bound)
        b = jax.random.uniform(kb, (fan_out,), jnp.float32, -bound, bound)
        return w, b

    w1, b1 = lin(ks[0], ks[1], input_shape, hidden)
    w2, b2 = lin(ks[2], ks[3], hidden, hidden)
    w3, b3 = lin(ks[4], ks[5], hidden, 1)
    return (w1, b1, w2, b2, w3, b3)


def _reference(inputs, params):
    w1, b1, w2, b2, w3, b3 = params
    h1 = jax.nn.relu(inputs @ w1 + b1)
    h2 = jax.nn.relu(h1 @ w2 + b2)
    return h2 @ w3 + b3


if __name__ == "__main__":
    # Small shapes consistent with RoleValueNet._build_inputs:
    #   obs_dim=12, n_agents=4  -> input_shape = 12 + 4 = 16
    #   rnn_hidden_dim = 32, bs = 2, t_role = 4
    key = jax.random.PRNGKey(0)
    bs, t_role, n_agents, obs_dim, hidden = 2, 4, 4, 12, 32
    input_shape = obs_dim + n_agents

    k_obs, k_param = jax.random.split(key)
    obs = jax.random.normal(k_obs, (bs, t_role, n_agents, obs_dim), jnp.float32)
    agent_onehot = jnp.broadcast_to(
        jnp.eye(n_agents, dtype=jnp.float32)[None, None],
        (bs, t_role, n_agents, n_agents))
    # matches th.cat([obs, one_hot], dim=-1)
    inputs = jnp.concatenate([obs, agent_onehot], axis=-1)

    params = init_params(k_param, input_shape, hidden)

    v = role_value_net(inputs, params)
    v = jax.block_until_ready(v)

    assert v.shape == (bs, t_role, n_agents, 1), v.shape

    v_ref = _reference(inputs, params)
    if not jnp.allclose(v, v_ref, atol=1e-5, rtol=1e-5):
        raise AssertionError("Pallas kernel mismatch vs JAX reference")

    print("KERNEL_OK")
</pallas_src>

<mosaic_0001>
module attributes {stable_mosaic.version = 11 : i64} {
  func.func @_role_value_kernel(%arg0: i32, %arg1: memref<32x16xf32, #tpu.memory_space<vmem>>, %arg2: memref<16x32xf32, #tpu.memory_space<vmem>>, %arg3: memref<1x32xf32, #tpu.memory_space<vmem>>, %arg4: memref<32x32xf32, #tpu.memory_space<vmem>>, %arg5: memref<1x32xf32, #tpu.memory_space<vmem>>, %arg6: memref<1x32xf32, #tpu.memory_space<vmem>>, %arg7: memref<1xf32, #tpu.memory_space<smem>>, %arg8: memref<1x32xf32, #tpu.memory_space<vmem>>) attributes {dimension_semantics = [#tpu.dimension_semantics<parallel>], iteration_bounds = array<i64: 1>, scalar_prefetch = 0 : i64, scratch_operands = 0 : i64, tpu.core_type = #tpu.core_type<tc>, window_params = [{transform_indices = @transform_0, window_bounds = array<i64: 32, 16>}, {pipeline_mode = #tpu.pipeline_mode<synchronous>, transform_indices = @transform_1, window_bounds = array<i64: 16, 32>}, {pipeline_mode = #tpu.pipeline_mode<synchronous>, transform_indices = @transform_2, window_bounds = array<i64: 1, 32>}, {pipeline_mode = #tpu.pipeline_mode<synchronous>, transform_indices = @transform_3, window_bounds = array<i64: 32, 32>}, {pipeline_mode = #tpu.pipeline_mode<synchronous>, transform_indices = @transform_4, window_bounds = array<i64: 1, 32>}, {pipeline_mode = #tpu.pipeline_mode<synchronous>, transform_indices = @transform_5, window_bounds = array<i64: 1, 32>}, {transform_indices = @transform_6, window_bounds = array<i64: 1>}, {transform_indices = @transform_7, window_bounds = array<i64: 1, 32>}]} {
    %c0 = arith.constant 0 : index
    %c0_0 = arith.constant 0 : index
    %0 = vector.load %arg1[%c0, %c0_0] : memref<32x16xf32, #tpu.memory_space<vmem>>, vector<32x16xf32>
    %c0_1 = arith.constant 0 : index
    %c0_2 = arith.constant 0 : index
    %1 = vector.load %arg2[%c0_1, %c0_2] : memref<16x32xf32, #tpu.memory_space<vmem>>, vector<16x32xf32>
    %cst = arith.constant dense<0.000000e+00> : vector<32x32xf32>
    %2 = tpu.matmul %0, %1, %cst {dimension_numbers = #tpu.dot_dimension_numbers<[1], [0], [0], [1], [0, 0, 1, 1], [], []>} : vector<32x16xf32>, vector<16x32xf32>, vector<32x32xf32> -> vector<32x32xf32>
    %c0_3 = arith.constant 0 : index
    %c0_4 = arith.constant 0 : index
    %3 = vector.load %arg3[%c0_3, %c0_4] : memref<1x32xf32, #tpu.memory_space<vmem>>, vector<1x32xf32>
    %4 = vector.broadcast %3 : vector<1x32xf32> to vector<32x32xf32>
    %5 = arith.addf %2, %4 : vector<32x32xf32>
    %cst_5 = arith.constant 0.000000e+00 : f32
    %6 = vector.broadcast %cst_5 : f32 to vector<32x32xf32>
    %7 = arith.maximumf %5, %6 : vector<32x32xf32>
    %c0_6 = arith.constant 0 : index
    %c0_7 = arith.constant 0 : index
    %8 = vector.load %arg4[%c0_6, %c0_7] : memref<32x32xf32, #tpu.memory_space<vmem>>, vector<32x32xf32>
    %cst_8 = arith.constant dense<0.000000e+00> : vector<32x32xf32>
    %9 = tpu.matmul %7, %8, %cst_8 {dimension_numbers = #tpu.dot_dimension_numbers<[1], [0], [0], [1], [0, 0, 1, 1], [], []>} : vector<32x32xf32>, vector<32x32xf32>, vector<32x32xf32> -> vector<32x32xf32>
    %c0_9 = arith.constant 0 : index
    %c0_10 = arith.constant 0 : index
    %10 = vector.load %arg5[%c0_9, %c0_10] : memref<1x32xf32, #tpu.memory_space<vmem>>, vector<1x32xf32>
    %11 = vector.broadcast %10 : vector<1x32xf32> to vector<32x32xf32>
    %12 = arith.addf %9, %11 : vector<32x32xf32>
    %cst_11 = arith.constant 0.000000e+00 : f32
    %13 = vector.broadcast %cst_11 : f32 to vector<32x32xf32>
    %14 = arith.maximumf %12, %13 : vector<32x32xf32>
    %c0_12 = arith.constant 0 : index
    %c0_13 = arith.constant 0 : index
    %15 = vector.load %arg6[%c0_12, %c0_13] : memref<1x32xf32, #tpu.memory_space<vmem>>, vector<1x32xf32>
    %16 = vector.shape_cast %15 : vector<1x32xf32> to vector<1x32xf32>
    %17 = vector.broadcast %16 : vector<1x32xf32> to vector<8x32xf32>
    %cst_14 = arith.constant dense<0.000000e+00> : vector<8x32xf32>
    %18 = tpu.matmul %17, %14, %cst_14 {dimension_numbers = #tpu.dot_dimension_numbers<[1], [1], [0], [0], [0, 0, 1, 0], [], []>} : vector<8x32xf32>, vector<32x32xf32>, vector<8x32xf32> -> vector<8x32xf32>
    %19 = vector.extract_strided_slice %18 {offsets = [0, 0], sizes = [1, 32], strides = [1, 1]} : vector<8x32xf32> to vector<1x32xf32>
    %c0_15 = arith.constant 0 : index
    %20 = memref.load %arg7[%c0_15] : memref<1xf32, #tpu.memory_space<smem>>
    %21 = vector.broadcast %20 : f32 to vector<1x32xf32>
    %22 = arith.addf %19, %21 : vector<1x32xf32>
    %c0_16 = arith.constant 0 : index
    %c0_17 = arith.constant 0 : index
    %23 = vector.load %arg8[%c0_16, %c0_17] : memref<1x32xf32, #tpu.memory_space<vmem>>, vector<1x32xf32>
    tpu.vector_store %arg8[%c0_16, %c0_17], %22 {strides = array<i32>} : memref<1x32xf32, #tpu.memory_space<vmem>>, vector<1x32xf32>,
    return
  }
  func.func @transform_0(%arg0: i32) -> (i32, i32) {
    %c0_i32 = arith.constant 0 : i32
    %c0_i32_0 = arith.constant 0 : i32
    return %arg0, %c0_i32 : i32, i32
  }
  func.func @transform_1(%arg0: i32) -> (i32, i32) {
    %c0_i32 = arith.constant 0 : i32
    %c0_i32_0 = arith.constant 0 : i32
    %c0_i32_1 = arith.constant 0 : i32
    return %c0_i32, %c0_i32_0 : i32, i32
  }
  func.func @transform_2(%arg0: i32) -> (i32, i32) {
    %c0_i32 = arith.constant 0 : i32
    %c0_i32_0 = arith.constant 0 : i32
    %c0_i32_1 = arith.constant 0 : i32
    return %c0_i32, %c0_i32_0 : i32, i32
  }
  func.func @transform_3(%arg0: i32) -> (i32, i32) {
    %c0_i32 = arith.constant 0 : i32
    %c0_i32_0 = arith.constant 0 : i32
    %c0_i32_1 = arith.constant 0 : i32
    return %c0_i32, %c0_i32_0 : i32, i32
  }
  func.func @transform_4(%arg0: i32) -> (i32, i32) {
    %c0_i32 = arith.constant 0 : i32
    %c0_i32_0 = arith.constant 0 : i32
    %c0_i32_1 = arith.constant 0 : i32
    return %c0_i32, %c0_i32_0 : i32, i32
  }
  func.func @transform_5(%arg0: i32) -> (i32, i32) {
    %c0_i32 = arith.constant 0 : i32
    %c0_i32_0 = arith.constant 0 : i32
    %c0_i32_1 = arith.constant 0 : i32
    return %c0_i32, %c0_i32_0 : i32, i32
  }
  func.func @transform_6(%arg0: i32) -> i32 {
    %c0_i32 = arith.constant 0 : i32
    %c0_i32_0 = arith.constant 0 : i32
    return %c0_i32 : i32
  }
  func.func @transform_7(%arg0: i32) -> (i32, i32) {
    %c0_i32 = arith.constant 0 : i32
    %c0_i32_0 = arith.constant 0 : i32
    return %c0_i32, %arg0 : i32, i32
  }
}

</mosaic_0001>

<llo_original>
// kernel: role_value_net.1
$region0: #{role_value_net.1}
  #allocation0 [shape = 'u32[]', space=smem, size = 0x4, offset = 0x4, fixed_abs, tag = 'smem constant byte address 0x4 - core index']
  #allocation1 [shape = 'u32[72,128]{1,0:T(1,128)}', space=vmem, size = 0x9000, scoped, tag = 'internal scratch']
  #allocation2 [shape = 'f32[1]{0:T(128)S(6)}', space=smem, size = 0x200, scoped, tag = 'scoped memory for role_value_net.1']
  %s0 = inlined_call_operand.hbm [shape: f32[32,16], index: 0, kind: input, shape index: {}]
  %s1 = inlined_call_operand.hbm [shape: f32[16,32], index: 1, kind: input, shape index: {}]
  %s2 = inlined_call_operand.vmem [shape: f32[1,32], index: 2, kind: input, shape index: {}]
  %s3 = inlined_call_operand.hbm [shape: f32[32,32], index: 3, kind: input, shape index: {}]
  %s4 = inlined_call_operand.vmem [shape: f32[1,32], index: 4, kind: input, shape index: {}]
  %s5 = inlined_call_operand.vmem [shape: f32[1,32], index: 5, kind: input, shape index: {}]
  %s6 = inlined_call_operand.<no memory space> [shape: f32[1], index: 6, kind: input, shape index: {}]
  %s7 = inlined_call_operand.vmem [shape: f32[1,32], index: 7, kind: output, shape index: {}]
  %s8 = sld [smem:[#allocation0]]
  $region50: #{role_value_net.1} parent=0
    _
  %s10 = ssub.s32 1, %s8
  %s11 = scalar_select 0, %s10, %s8
  %12 = sst [smem:[#allocation2]] %s6
  $region1: #{role_value_net.1} parent=0
    #allocation3 [shape = 'u8[16384]{0}', space=vmem, size = 0x4000, scoped, tag = 'input window, operand 0, single buffered']
    #allocation4 [shape = 's32[1]{0}', space=sflag, size = 0x4, scoped, tag = 'scoped memory for role_value_net.1']
    #allocation5 [shape = 'u8[8192]{0}', space=vmem, size = 0x2000, scoped, tag = 'input window, operand 1, single buffered']
    #allocation6 [shape = 's32[1]{0}', space=sflag, size = 0x4, scoped, tag = 'scoped memory for role_value_net.1']
    #allocation7 [shape = 'u8[16384]{0}', space=vmem, size = 0x4000, scoped, tag = 'input window, operand 3, single buffered']
    %13 = vsyncpa [#allocation4], 0
    %14 = vsyncpa [#allocation6], 0
    // Predicated region
    $region2: #{role_value_net.1} parent=1 // pred_check
      _
    $region3: #{role_value_net.1} parent=1 // pred_check_branch
      %16 = sbr.rel (0) target = $region5
    $region4: #{role_value_net.1} parent=1 // pred_region
      %18 = vsyncadd [#allocation4], 0
      %s19 = sshll.u32 %s0, 4
      %s20 = int_to_ptr.hbm [resolvable:$true] %s19
      %s21 = sshll.u32 [#allocation3], 4
      %s22 = int_to_ptr.vmem [resolvable:$true] %s21
      %27 = dma.hbm_to_vmem [thread:$0]  %s20, 512, %s22, [#allocation4], 128, 128, 8
    $region5: #{role_value_net.1} parent=1 // pred_fallthru
      _
    // Predicated region
    $region6: #{role_value_net.1} parent=1 // pred_check
      _
    $region7: #{role_value_net.1} parent=1 // pred_check_branch
      %29 = sbr.rel (0) target = $region9
    $region8: #{role_value_net.1} parent=1 // pred_region
      %31 = vsyncadd [#allocation6], 0
      %s32 = sshll.u32 %s1, 4
      %s33 = int_to_ptr.hbm [resolvable:$true] %s32
      %s34 = sshll.u32 [#allocation5], 4
      %s35 = int_to_ptr.vmem [resolvable:$true] %s34
      %40 = dma.hbm_to_vmem [thread:$0]  %s33, 256, %s35, [#allocation6], 128, 128, 8
    $region9: #{role_value_net.1} parent=1 // pred_fallthru
      _
    // Predicated region
    $region10: #{role_value_net.1} parent=1 // pred_check
      _
    $region11: #{role_value_net.1} parent=1 // pred_check_branch
      %42 = sbr.rel (0) target = $region13
    $region12: #{role_value_net.1} parent=1 // pred_region
      _
    $region13: #{role_value_net.1} parent=1 // pred_fallthru
      _
    // Predicated region
    $region14: #{role_value_net.1} parent=1 // pred_check
      _
    $region15: #{role_value_net.1} parent=1 // pred_check_branch
      %44 = sbr.rel (0) target = $region17
    $region16: #{role_value_net.1} parent=1 // pred_region
      %46 = vsyncadd [#allocation6], 0
      %s47 = sshll.u32 %s3, 4
      %s48 = int_to_ptr.hbm [resolvable:$true] %s47
      %s49 = sshll.u32 [#allocation7], 4
      %s50 = int_to_ptr.vmem [resolvable:$true] %s49
      %55 = dma.hbm_to_vmem [thread:$0]  %s48, 512, %s50, [#allocation6], 128, 128, 8
    $region17: #{role_value_net.1} parent=1 // pred_fallthru
      _
    // Predicated region
    $region18: #{role_value_net.1} parent=1 // pred_check
      _
    $region19: #{role_value_net.1} parent=1 // pred_check_branch
      %57 = sbr.rel (0) target = $region21
    $region20: #{role_value_net.1} parent=1 // pred_region
      _
    $region21: #{role_value_net.1} parent=1 // pred_fallthru
      _
    // Predicated region
    $region22: #{role_value_net.1} parent=1 // pred_check
      _
    $region23: #{role_value_net.1} parent=1 // pred_check_branch
      %59 = sbr.rel (0) target = $region25
    $region24: #{role_value_net.1} parent=1 // pred_region
      _
    $region25: #{role_value_net.1} parent=1 // pred_fallthru
      _
    // Predicated region
    $region26: #{role_value_net.1} parent=1 // pred_check
      _
    $region27: #{role_value_net.1} parent=1 // pred_check_branch
      %61 = sbr.rel (0) target = $region29
    $region28: #{role_value_net.1} parent=1 // pred_region
      _
    $region29: #{role_value_net.1} parent=1 // pred_fallthru
      _
    // Predicated region
    $region30: #{role_value_net.1} parent=1 // pred_check
      _
    $region31: #{role_value_net.1} parent=1 // pred_check_branch
      %63 = sbr.rel (0) target = $region33
    $region32: #{role_value_net.1} parent=1 // pred_region
      %65 = dma.done [#allocation4], 512
    $region33: #{role_value_net.1} parent=1 // pred_fallthru
      _
    // Predicated region
    $region34: #{role_value_net.1} parent=1 // pred_check
      _
    $region35: #{role_value_net.1} parent=1 // pred_check_branch
      %67 = sbr.rel (0) target = $region37
    $region36: #{role_value_net.1} parent=1 // pred_region
      %69 = dma.done [#allocation6], 256
    $region37: #{role_value_net.1} parent=1 // pred_fallthru
      _
    // Predicated region
    $region38: #{role_value_net.1} parent=1 // pred_check
      _
    $region39: #{role_value_net.1} parent=1 // pred_check_branch
      %71 = sbr.rel (0) target = $region41
    $region40: #{role_value_net.1} parent=1 // pred_region
      %73 = dma.done [#allocation6], 512
    $region41: #{role_value_net.1} parent=1 // pred_fallthru
      _
    %v74 = vld [vmem:[#allocation3] sm:$0xff]
    %v75 = vld [vmem:[#allocation3 + $0x8] sm:$0xff]
    %v76 = vld [vmem:[#allocation3 + $0x10] sm:$0xff]
    %v77 = vld [vmem:[#allocation3 + $0x18] sm:$0xff]
    %v78 = vld [vmem:[#allocation5] sm:$0xff]
    %v79 = vld [vmem:[#allocation5 + $0x8] sm:$0xff]
    %v80 = vld [vmem:[%s2] sm:$0x1]
    %v82 = vperm.slane %v80, 0
    %vm84 = vcmask 130048
    %v86 = vsel %vm84, %v74, 0
    %v89 = vsel %vm84, %v75, 0
    %v92 = vsel %vm84, %v76, 0
    %v95 = vsel %vm84, %v77, 0
    %97 = vmatpush.msra.mxu0 0.0
    %98 = vmatpush.msra.mxu0 0.0
    %99 = vmatpush.msra.mxu0 0.0
    %100 = vmatpush.msra.mxu0 0.0
    %101 = vmatpush.msra.mxu0 0.0
    %102 = vmatpush.msra.mxu0 0.0
    %103 = vmatpush.msra.mxu0 0.0
    %104 = vmatpush.msra.mxu0 0.0
    %105 = vmatpush.msra.mxu0 0.0
    %106 = vmatpush.msra.mxu0 0.0
    %107 = vmatpush.msra.mxu0 0.0
    %108 = vmatpush.msra.mxu0 0.0
    %109 = vmatpush.msra.mxu0 0.0
    %110 = vmatpush.msra.mxu0 0.0
    %111 = vmatpush.msra.mxu0 %v79
    %112 = vmatpush.msra.mxu0 %v78
    %113 = vmatmul.f32.gmra.mxu0 %v86
    %v114 = vpop.f32.mrf.mxu0
    %v115 = vadd.f32 %v82, %v114
    %116 = vmatmul.f32.gmra.mxu0 %v89
    %v117 = vpop.f32.mrf.mxu0
    %v118 = vadd.f32 %v82, %v117
    %119 = vmatmul.f32.gmra.mxu0 %v92
    %v120 = vpop.f32.mrf.mxu0
    %v121 = vadd.f32 %v82, %v120
    %122 = vmatmul.f32.gmra.mxu0 %v95
    %v123 = vpop.f32.mrf.mxu0
    %v124 = vadd.f32 %v82, %v123
    %125 = vdwg.mxu0
    %v126 = vmax.f32 %v115, 0.0
    %v127 = vmax.f32 %v118, 0.0
    %v128 = vmax.f32 %v121, 0.0
    %v129 = vmax.f32 %v124, 0.0
    %v130 = vld [vmem:[#allocation7] sm:$0xff]
    %v131 = vld [vmem:[#allocation7 + $0x8] sm:$0xff]
    %v132 = vld [vmem:[#allocation7 + $0x10] sm:$0xff]
    %v133 = vld [vmem:[#allocation7 + $0x18] sm:$0xff]
    %v134 = vld [vmem:[%s4] sm:$0x1]
    %v136 = vperm.slane %v134, 0
    %vm138 = vcmask 261120
    %v140 = vsel %vm138, %v126, 0
    %v143 = vsel %vm138, %v127, 0
    %v146 = vsel %vm138, %v128, 0
    %v149 = vsel %vm138, %v129, 0
    %151 = vmatpush.msra.mxu0 0.0
    %152 = vmatpush.msra.mxu0 0.0
    %153 = vmatpush.msra.mxu0 0.0
    %154 = vmatpush.msra.mxu0 0.0
    %155 = vmatpush.msra.mxu0 0.0
    %156 = vmatpush.msra.mxu0 0.0
    %157 = vmatpush.msra.mxu0 0.0
    %158 = vmatpush.msra.mxu0 0.0
    %159 = vmatpush.msra.mxu0 0.0
    %160 = vmatpush.msra.mxu0 0.0
    %161 = vmatpush.msra.mxu0 0.0
    %162 = vmatpush.msra.mxu0 0.0
    %163 = vmatpush.msra.mxu0 %v133
    %164 = vmatpush.msra.mxu0 %v132
    %165 = vmatpush.msra.mxu0 %v131
    %166 = vmatpush.msra.mxu0 %v130
    %167 = vmatmul.f32.gmra.mxu0 %v140
    %v168 = vpop.f32.mrf.mxu0
    %v169 = vadd.f32 %v136, %v168
    %170 = vmatmul.f32.gmra.mxu0 %v143
    %v171 = vpop.f32.mrf.mxu0
    %v172 = vadd.f32 %v136, %v171
    %173 = vmatmul.f32.gmra.mxu0 %v146
    %v174 = vpop.f32.mrf.mxu0
    %v175 = vadd.f32 %v136, %v174
    %176 = vmatmul.f32.gmra.mxu0 %v149
    %v177 = vpop.f32.mrf.mxu0
    %v178 = vadd.f32 %v136, %v177
    %179 = vdwg.mxu0
    %v180 = vmax.f32 %v169, 0.0
    %v181 = vmax.f32 %v172, 0.0
    %v182 = vmax.f32 %v175, 0.0
    %v183 = vmax.f32 %v178, 0.0
    %v184 = vld [vmem:[%s5] sm:$0x1]
    %v186 = vperm.slane %v184, 0
    %v187 = vsel %vm138, %v186, 0
    %v190 = vsel %vm138, %v180, 0
    %v193 = vsel %vm138, %v181, 0
    %v196 = vsel %vm138, %v182, 0
    %v199 = vsel %vm138, %v183, 0
    %201 = vmatpush.xpose.msra.mxu0 0.0
    %202 = vmatpush.xpose.msra.mxu0 0.0
    %203 = vmatpush.xpose.msra.mxu0 0.0
    %204 = vmatpush.xpose.msra.mxu0 0.0
    %205 = vmatpush.xpose.msra.mxu0 0.0
    %206 = vmatpush.xpose.msra.mxu0 0.0
    %207 = vmatpush.xpose.msra.mxu0 0.0
    %208 = vmatpush.xpose.msra.mxu0 0.0
    %209 = vmatpush.xpose.msra.mxu0 0.0
    %210 = vmatpush.xpose.msra.mxu0 0.0
    %211 = vmatpush.xpose.msra.mxu0 0.0
    %212 = vmatpush.xpose.msra.mxu0 0.0
    %213 = vmatpush.xpose.msra.mxu0 %v199
    %214 = vmatpush.xpose.msra.mxu0 %v196
    %215 = vmatpush.xpose.msra.mxu0 %v193
    %216 = vmatpush.xpose.msra.mxu0 %v190
    %217 = vmatmul.f32.gmra.mxu0 %v187
    %v218 = vpop.f32.mrf.mxu0
    %v219 = vadd.f32 0.0, %v218
    %220 = vdwg.mxu0
    %s221 = sld [smem:[#allocation2]]
    %v222 = vstv %s221
    %v223 = vadd.f32 %v219, %v222
    %vm224 = vcmask 253952
    %225 = vst.msk [vmem:[%s7] sm:$0x1] %vm224, %v223
    // Predicated region
    $region42: #{role_value_net.1} parent=1 // pred_check
      _
    $region43: #{role_value_net.1} parent=1 // pred_check_branch
      %227 = sbr.rel (0) target = $region45
    $region44: #{role_value_net.1} parent=1 // pred_region
      _
    $region45: #{role_value_net.1} parent=1 // pred_fallthru
      _
    // Predicated region
    $region46: #{role_value_net.1} parent=1 // pred_check
      _
    $region47: #{role_value_net.1} parent=1 // pred_check_branch
      %229 = sbr.rel (0) target = $region49
    $region48: #{role_value_net.1} parent=1 // pred_region
      _
    $region49: #{role_value_net.1} parent=1 // pred_fallthru
      _
    %230 = vsyncpa [#allocation4], 1
    %231 = vsyncpa [#allocation6], 1

</llo_original>
